<compile_context>
chip_gen: v7x
topology: tpu7x:2x2x1
jax: 0.10.0
libtpu: 0.0.40
codegen_flags: <defaults>
</compile_context>

<pallas_src>
import jax
import jax.numpy as jnp
from jax.experimental import pallas as pl
from jax.experimental.pallas import tpu as pltpu

D_IN = 200
D_HID = 16
D_OUT = 200


def _round_up(x, m):
    return (x + m - 1) // m * m


def fused_mlp_kernel(x_ref, w_ref, b_ref, o_ref):
    # One batch tile: (tb, D_in) @ (D_in, D_out) + (1, D_out), f32 accumulate.
    acc = jnp.dot(x_ref[...], w_ref[...], preferred_element_type=jnp.float32)
    o_ref[...] = (acc + b_ref[...]).astype(o_ref.dtype)


def mlp1_forward(x, w1, b1, w2, b2, w3, b3, *, block_b=2048):
    # --- Fuse the activation-free Linear chain into one affine map (f32). ---
    w_fused = (w1 @ w2) @ w3                       # (200, 200) f32
    b_fused = (b1 @ w2 + b2) @ w3 + b3             # (1, 200)   f32

    batch = x.shape[0]
    d_in = w_fused.shape[0]
    d_out = w_fused.shape[1]

    # --- Batch tiling: ragged grid, no padding.  Cap the tile at ~half the
    # batch (rounded to the f32 sublane multiple of 8) so the "parallel" axis
    # has >=2 tiles and feeds both TensorCores on v7x when batch allows.
    half = _round_up(pl.cdiv(batch, 2), 8)
    tb = max(8, min(block_b, half))
    grid = (pl.cdiv(batch, tb),)

    cost = pl.CostEstimate(
        flops=2 * batch * d_in * d_out,
        transcendentals=0,
        bytes_accessed=(batch * d_in * 4          # x read
                        + d_in * d_out * 4        # W read
                        + d_out * 4               # b read
                        + batch * d_out * 4),     # out write
    )

    out = pl.pallas_call(
        fused_mlp_kernel,
        out_shape=jax.ShapeDtypeStruct((batch, d_out), x.dtype),
        grid=grid,
        in_specs=[
            pl.BlockSpec((tb, d_in), lambda i: (i, 0)),        # x: streamed
            pl.BlockSpec((d_in, d_out), lambda i: (0, 0)),     # W: resident
            pl.BlockSpec((1, d_out), lambda i: (0, 0)),        # b: resident
        ],
        out_specs=pl.BlockSpec((tb, d_out), lambda i: (i, 0)),
        compiler_params=pltpu.CompilerParams(
            dimension_semantics=("parallel",),    # megacore sharding on v7x
        ),
        cost_estimate=cost,
    )(x, w_fused, b_fused)

    return out


def init_params(key):
    # Deterministic synthetic init (shapes match MLP1.__init__):
    #   Linear(200, 16), Linear(16, 16), Linear(16, 200)
    # stored as (in_features, out_features) = transpose of nn.Linear.weight.
    k1, k2, k3, k4, k5, k6 = jax.random.split(key, 6)
    w1 = jax.random.normal(k1, (D_IN, D_HID), jnp.float32) * 0.05
    b1 = jax.random.normal(k2, (1, D_HID), jnp.float32) * 0.05
    w2 = jax.random.normal(k3, (D_HID, D_HID), jnp.float32) * 0.05
    b2 = jax.random.normal(k4, (1, D_HID), jnp.float32) * 0.05
    w3 = jax.random.normal(k5, (D_HID, D_OUT), jnp.float32) * 0.05
    b3 = jax.random.normal(k6, (1, D_OUT), jnp.float32) * 0.05
    return w1, b1, w2, b2, w3, b3


if __name__ == "__main__":
    key = jax.random.PRNGKey(0)
    kx, kp = jax.random.split(key)

    B = 8  # small batch for the check
    x = jax.random.normal(kx, (B, D_IN), jnp.float32)
    w1, b1, w2, b2, w3, b3 = init_params(kp)

    out = mlp1_forward(x, w1, b1, w2, b2, w3, b3)
    out = jax.block_until_ready(out)

    # Pure-JAX reference of the original (unfused) chain of Linears.
    ref = ((x @ w1 + b1) @ w2 + b2) @ w3 + b3
    assert out.shape == (B, D_OUT)
    # Tolerance covers MXU matmul precision + the algebraic re-association.
    assert jnp.allclose(out, ref, atol=5e-3, rtol=5e-2), float(
        jnp.max(jnp.abs(out - ref)))

    print("KERNEL_OK")
</pallas_src>

<mosaic_0001>
module attributes {stable_mosaic.version = 11 : i64} {
  func.func @fused_mlp_kernel(%arg0: i32, %arg1: memref<8x200xf32, #tpu.memory_space<vmem>>, %arg2: memref<200x200xf32, #tpu.memory_space<vmem>>, %arg3: memref<1x200xf32, #tpu.memory_space<vmem>>, %arg4: memref<8x200xf32, #tpu.memory_space<vmem>>) attributes {dimension_semantics = [#tpu.dimension_semantics<parallel>], iteration_bounds = array<i64: 1>, scalar_prefetch = 0 : i64, scratch_operands = 0 : i64, tpu.core_type = #tpu.core_type<tc>, window_params = [{transform_indices = @transform_0, window_bounds = array<i64: 8, 200>}, {pipeline_mode = #tpu.pipeline_mode<synchronous>, transform_indices = @transform_1, window_bounds = array<i64: 200, 200>}, {pipeline_mode = #tpu.pipeline_mode<synchronous>, transform_indices = @transform_2, window_bounds = array<i64: 1, 200>}, {transform_indices = @transform_3, window_bounds = array<i64: 8, 200>}]} {
    %c0 = arith.constant 0 : index
    %c0_0 = arith.constant 0 : index
    %0 = vector.load %arg1[%c0, %c0_0] : memref<8x200xf32, #tpu.memory_space<vmem>>, vector<8x200xf32>
    %c0_1 = arith.constant 0 : index
    %c0_2 = arith.constant 0 : index
    %1 = vector.load %arg2[%c0_1, %c0_2] : memref<200x200xf32, #tpu.memory_space<vmem>>, vector<200x200xf32>
    %cst = arith.constant dense<0.000000e+00> : vector<8x200xf32>
    %2 = tpu.matmul %0, %1, %cst {dimension_numbers = #tpu.dot_dimension_numbers<[1], [0], [0], [1], [0, 0, 1, 1], [], []>} : vector<8x200xf32>, vector<200x200xf32>, vector<8x200xf32> -> vector<8x200xf32>
    %c0_3 = arith.constant 0 : index
    %c0_4 = arith.constant 0 : index
    %3 = vector.load %arg3[%c0_3, %c0_4] : memref<1x200xf32, #tpu.memory_space<vmem>>, vector<1x200xf32>
    %4 = vector.broadcast %3 : vector<1x200xf32> to vector<8x200xf32>
    %5 = arith.addf %2, %4 : vector<8x200xf32>
    %c0_5 = arith.constant 0 : index
    %c0_6 = arith.constant 0 : index
    %6 = vector.load %arg4[%c0_5, %c0_6] : memref<8x200xf32, #tpu.memory_space<vmem>>, vector<8x200xf32>
    tpu.vector_store %arg4[%c0_5, %c0_6], %5 {strides = array<i32>} : memref<8x200xf32, #tpu.memory_space<vmem>>, vector<8x200xf32>,
    return
  }
  func.func @transform_0(%arg0: i32) -> (i32, i32) {
    %c0_i32 = arith.constant 0 : i32
    %c0_i32_0 = arith.constant 0 : i32
    return %arg0, %c0_i32 : i32, i32
  }
  func.func @transform_1(%arg0: i32) -> (i32, i32) {
    %c0_i32 = arith.constant 0 : i32
    %c0_i32_0 = arith.constant 0 : i32
    %c0_i32_1 = arith.constant 0 : i32
    return %c0_i32, %c0_i32_0 : i32, i32
  }
  func.func @transform_2(%arg0: i32) -> (i32, i32) {
    %c0_i32 = arith.constant 0 : i32
    %c0_i32_0 = arith.constant 0 : i32
    %c0_i32_1 = arith.constant 0 : i32
    return %c0_i32, %c0_i32_0 : i32, i32
  }
  func.func @transform_3(%arg0: i32) -> (i32, i32) {
    %c0_i32 = arith.constant 0 : i32
    %c0_i32_0 = arith.constant 0 : i32
    return %arg0, %c0_i32 : i32, i32
  }
}

</mosaic_0001>

<llo_original>
// kernel: tpu_custom_call.1
$region0: #{tpu_custom_call.1}
  #allocation0 [shape = 'u32[]', space=smem, size = 0x4, offset = 0x4, fixed_abs, tag = 'smem constant byte address 0x4 - core index']
  #allocation1 [shape = 'u32[144,128]{1,0:T(1,128)}', space=vmem, size = 0x12000, scoped, tag = 'internal scratch']
  %s0 = inlined_call_operand.hbm [shape: f32[8,200], index: 0, kind: input, shape index: {}]
  %s1 = inlined_call_operand.hbm [shape: f32[200,200], index: 1, kind: input, shape index: {}]
  %s2 = inlined_call_operand.vmem [shape: f32[1,200], index: 2, kind: input, shape index: {}]
  %s3 = inlined_call_operand.hbm [shape: f32[8,200], index: 3, kind: output, shape index: {}]
  %s4 = sld [smem:[#allocation0]]
  $region30: #{tpu_custom_call.1} parent=0
    _
  %s6 = ssub.s32 1, %s4
  %s7 = scalar_select 0, %s6, %s4
  $region1: #{tpu_custom_call.1} parent=0
    #allocation2 [shape = 'u8[8192]{0}', space=vmem, size = 0x2000, scoped, tag = 'input window, operand 0, single buffered']
    #allocation3 [shape = 's32[1]{0}', space=sflag, size = 0x4, scoped, tag = 'scoped memory for tpu_custom_call.1']
    #allocation4 [shape = 's32[1]{0}', space=sflag, size = 0x4, scoped, tag = 'scoped memory for tpu_custom_call.1']
    #allocation5 [shape = 'u8[204800]{0}', space=vmem, size = 0x32000, scoped, tag = 'input window, operand 1, single buffered']
    #allocation6 [shape = 's32[1]{0}', space=sflag, size = 0x4, scoped, tag = 'scoped memory for tpu_custom_call.1']
    #allocation7 [shape = 'u8[8192]{0}', space=vmem, size = 0x2000, scoped, tag = 'output window, operand 0, single buffered']
    %8 = vsyncpa [#allocation3], 0
    %9 = vsyncpa [#allocation6], 0
    %10 = vsyncpa [#allocation4], 0
    // Predicated region
    $region2: #{tpu_custom_call.1} parent=1 // pred_check
      _
    $region3: #{tpu_custom_call.1} parent=1 // pred_check_branch
      %12 = sbr.rel (0) target = $region5
    $region4: #{tpu_custom_call.1} parent=1 // pred_region
      %s14 = ssub.s32 256, 256
      %15 = vsyncadd [#allocation3], %s14
      %s17 = sshll.u32 [#allocation2], 4
      %s18 = int_to_ptr.vmem [resolvable:$true] %s17
      %20 = dma.hbm_to_vmem [thread:$0]  %s0, 256, %s18, [#allocation3]
    $region5: #{tpu_custom_call.1} parent=1 // pred_fallthru
      _
    // Predicated region
    $region6: #{tpu_custom_call.1} parent=1 // pred_check
      _
    $region7: #{tpu_custom_call.1} parent=1 // pred_check_branch
      %22 = sbr.rel (0) target = $region9
    $region8: #{tpu_custom_call.1} parent=1 // pred_region
      %s24 = ssub.s32 6400, 6400
      %25 = vsyncadd [#allocation6], %s24
      %s26 = sshll.u32 [#allocation5], 4
      %s27 = int_to_ptr.vmem [resolvable:$true] %s26
      %32 = dma.hbm_to_vmem [thread:$0]  %s1, 6400, %s27, [#allocation6], 256, 256, 16
    $region9: #{tpu_custom_call.1} parent=1 // pred_fallthru
      _
    // Predicated region
    $region10: #{tpu_custom_call.1} parent=1 // pred_check
      _
    $region11: #{tpu_custom_call.1} parent=1 // pred_check_branch
      %34 = sbr.rel (0) target = $region13
    $region12: #{tpu_custom_call.1} parent=1 // pred_region
      _
    $region13: #{tpu_custom_call.1} parent=1 // pred_fallthru
      _
    // Predicated region
    $region14: #{tpu_custom_call.1} parent=1 // pred_check
      _
    $region15: #{tpu_custom_call.1} parent=1 // pred_check_branch
      %36 = sbr.rel (0) target = $region17
    $region16: #{tpu_custom_call.1} parent=1 // pred_region
      %37 = dma.done [#allocation3], 256
    $region17: #{tpu_custom_call.1} parent=1 // pred_fallthru
      _
    // Predicated region
    $region18: #{tpu_custom_call.1} parent=1 // pred_check
      _
    $region19: #{tpu_custom_call.1} parent=1 // pred_check_branch
      %39 = sbr.rel (0) target = $region21
    $region20: #{tpu_custom_call.1} parent=1 // pred_region
      %40 = dma.done [#allocation6], 6400
    $region21: #{tpu_custom_call.1} parent=1 // pred_fallthru
      _
    %v41 = vld [vmem:[#allocation2] sm:$0xff]
    %v42 = vld [vmem:[#allocation2 + $0x8] sm:$0xff]
    %v43 = vld [vmem:[#allocation5] sm:$0xff]
    %v44 = vld [vmem:[#allocation5 + $0x8] sm:$0xff]
    %v45 = vld [vmem:[#allocation5 + $0x10] sm:$0xff]
    %v46 = vld [vmem:[#allocation5 + $0x18] sm:$0xff]
    %v47 = vld [vmem:[#allocation5 + $0x20] sm:$0xff]
    %v48 = vld [vmem:[#allocation5 + $0x28] sm:$0xff]
    %v49 = vld [vmem:[#allocation5 + $0x30] sm:$0xff]
    %v50 = vld [vmem:[#allocation5 + $0x38] sm:$0xff]
    %v51 = vld [vmem:[#allocation5 + $0x40] sm:$0xff]
    %v52 = vld [vmem:[#allocation5 + $0x48] sm:$0xff]
    %v53 = vld [vmem:[#allocation5 + $0x50] sm:$0xff]
    %v54 = vld [vmem:[#allocation5 + $0x58] sm:$0xff]
    %v55 = vld [vmem:[#allocation5 + $0x60] sm:$0xff]
    %v56 = vld [vmem:[#allocation5 + $0x68] sm:$0xff]
    %v57 = vld [vmem:[#allocation5 + $0x70] sm:$0xff]
    %v58 = vld [vmem:[#allocation5 + $0x78] sm:$0xff]
    %v59 = vld [vmem:[#allocation5 + $0x80] sm:$0xff]
    %v60 = vld [vmem:[#allocation5 + $0x88] sm:$0xff]
    %v61 = vld [vmem:[#allocation5 + $0x90] sm:$0xff]
    %v62 = vld [vmem:[#allocation5 + $0x98] sm:$0xff]
    %v63 = vld [vmem:[#allocation5 + $0xa0] sm:$0xff]
    %v64 = vld [vmem:[#allocation5 + $0xa8] sm:$0xff]
    %v65 = vld [vmem:[#allocation5 + $0xb0] sm:$0xff]
    %v66 = vld [vmem:[#allocation5 + $0xb8] sm:$0xff]
    %v67 = vld [vmem:[#allocation5 + $0xc0] sm:$0xff]
    %v68 = vld [vmem:[#allocation5 + $0xc8] sm:$0xff]
    %v69 = vld [vmem:[#allocation5 + $0xd0] sm:$0xff]
    %v70 = vld [vmem:[#allocation5 + $0xd8] sm:$0xff]
    %v71 = vld [vmem:[#allocation5 + $0xe0] sm:$0xff]
    %v72 = vld [vmem:[#allocation5 + $0xe8] sm:$0xff]
    %v73 = vld [vmem:[#allocation5 + $0xf0] sm:$0xff]
    %v74 = vld [vmem:[#allocation5 + $0xf8] sm:$0xff]
    %v75 = vld [vmem:[#allocation5 + $0x100] sm:$0xff]
    %v76 = vld [vmem:[#allocation5 + $0x108] sm:$0xff]
    %v77 = vld [vmem:[#allocation5 + $0x110] sm:$0xff]
    %v78 = vld [vmem:[#allocation5 + $0x118] sm:$0xff]
    %v79 = vld [vmem:[#allocation5 + $0x120] sm:$0xff]
    %v80 = vld [vmem:[#allocation5 + $0x128] sm:$0xff]
    %v81 = vld [vmem:[#allocation5 + $0x130] sm:$0xff]
    %v82 = vld [vmem:[#allocation5 + $0x138] sm:$0xff]
    %v83 = vld [vmem:[#allocation5 + $0x140] sm:$0xff]
    %v84 = vld [vmem:[#allocation5 + $0x148] sm:$0xff]
    %v85 = vld [vmem:[#allocation5 + $0x150] sm:$0xff]
    %v86 = vld [vmem:[#allocation5 + $0x158] sm:$0xff]
    %v87 = vld [vmem:[#allocation5 + $0x160] sm:$0xff]
    %v88 = vld [vmem:[#allocation5 + $0x168] sm:$0xff]
    %v89 = vld [vmem:[#allocation5 + $0x170] sm:$0xff]
    %v90 = vld [vmem:[#allocation5 + $0x178] sm:$0xff]
    %v91 = vld [vmem:[#allocation5 + $0x180] sm:$0xff]
    %v92 = vld [vmem:[#allocation5 + $0x188] sm:$0xff]
    %v93 = vld [vmem:[%s2] sm:$0x3]
    %v95 = vlaneseq
    %v96 = vshrl.u32 %v95, 7
    %v97 = vsub.s32 0, %v96
    %v98 = vrot.slane %v93, %v97
    %v99 = vlaneseq
    %v100 = vshrl.u32 %v99, 7
    %v101 = vsub.s32 1, %v100
    %v102 = vrot.slane %v93, %v101
    %vm105 = vcmask 588800
    %v107 = vsel %vm105, %v42, 0
    %109 = vmatprep.subr.mxu0 %v44
    %110 = vmatpush1.msra.mxu0 %v43
    %111 = vmatprep.subr.mxu0 %v46
    %112 = vmatpush1.msra.mxu0 %v45
    %113 = vmatprep.subr.mxu0 %v48
    %114 = vmatpush1.msra.mxu0 %v47
    %115 = vmatprep.subr.mxu0 %v50
    %116 = vmatpush1.msra.mxu0 %v49
    %117 = vmatprep.subr.mxu0 %v52
    %118 = vmatpush1.msra.mxu0 %v51
    %119 = vmatprep.subr.mxu0 %v54
    %120 = vmatpush1.msra.mxu0 %v53
    %121 = vmatprep.subr.mxu0 %v56
    %122 = vmatpush1.msra.mxu0 %v55
    %123 = vmatprep.subr.mxu0 %v58
    %124 = vmatpush1.msra.mxu0 %v57
    %125 = vmatprep.subr.mxu0 %v60
    %126 = vmatpush1.msra.mxu0 %v59
    %127 = vmatprep.subr.mxu0 %v62
    %128 = vmatpush1.msra.mxu0 %v61
    %129 = vmatprep.subr.mxu0 %v64
    %130 = vmatpush1.msra.mxu0 %v63
    %131 = vmatprep.subr.mxu0 %v66
    %132 = vmatpush1.msra.mxu0 %v65
    %133 = vmatprep.subr.mxu0 %v68
    %134 = vmatpush1.msra.mxu0 %v67
    %135 = vmatprep.subr.mxu0 %v70
    %136 = vmatpush1.msra.mxu0 %v69
    %137 = vmatprep.subr.mxu0 %v72
    %138 = vmatpush1.msra.mxu0 %v71
    %139 = vmatprep.subr.mxu0 %v74
    %140 = vmatpush1.msra.mxu0 %v73
    %141 = vmatprep.subr.mxu0 %v76
    %142 = vmatpush1.msra.mxu0 %v75
    %143 = vmatprep.subr.mxu0 %v78
    %144 = vmatpush1.msra.mxu0 %v77
    %145 = vmatprep.subr.mxu0 %v80
    %146 = vmatpush1.msra.mxu0 %v79
    %147 = vmatprep.subr.mxu0 %v82
    %148 = vmatpush1.msra.mxu0 %v81
    %149 = vmatprep.subr.mxu0 %v84
    %150 = vmatpush1.msra.mxu0 %v83
    %151 = vmatprep.subr.mxu0 %v86
    %152 = vmatpush1.msra.mxu0 %v85
    %153 = vmatprep.subr.mxu0 %v88
    %154 = vmatpush1.msra.mxu0 %v87
    %155 = vmatprep.subr.mxu0 %v90
    %156 = vmatpush1.msra.mxu0 %v89
    %157 = vmatprep.subr.mxu0 %v92
    %158 = vmatpush1.msra.mxu0 %v91
    %159 = vmatprep.subr.mxu0 0.0
    %160 = vmatpush1.msra.mxu0 0.0
    %161 = vmatprep.subr.mxu0 0.0
    %162 = vmatpush1.msra.mxu0 0.0
    %163 = vmatprep.subr.mxu0 0.0
    %164 = vmatpush1.msra.mxu0 0.0
    %165 = vmatprep.subr.mxu0 0.0
    %166 = vmatpush1.msra.mxu0 0.0
    %167 = vmatprep.subr.mxu0 0.0
    %168 = vmatpush1.msra.mxu0 0.0
    %169 = vmatprep.subr.mxu0 0.0
    %170 = vmatpush1.msra.mxu0 0.0
    %171 = vmatprep.subr.mxu0 0.0
    %172 = vmatpush1.msra.mxu0 0.0
    %173 = vmatprep.mubr.f32.mxu0 %v107
    %174 = vmatmul.mubr.f32.gmra.mrb[0].mxu0 %v41
    %v175 = vpop.f32.mrb[0].mxu0
    %v176 = vadd.f32 %v98, %v175
    %v177 = vpop.f32.mrb[0].mxu0
    %v178 = vadd.f32 %v102, %v177
    %179 = vdwg.mxu0
    %180 = vst [vmem:[#allocation7] sm:$0xff] %v176
    %181 = vst.msk [vmem:[#allocation7 + $0x8] sm:$0xff] %vm105, %v178
    // Predicated region
    $region22: #{tpu_custom_call.1} parent=1 // pred_check
      _
    $region23: #{tpu_custom_call.1} parent=1 // pred_check_branch
      %183 = sbr.rel (0) target = $region25
    $region24: #{tpu_custom_call.1} parent=1 // pred_region
      %s185 = ssub.s32 256, 256
      %186 = vsyncadd [#allocation4], %s185
      %s188 = sshll.u32 [#allocation7], 4
      %s189 = int_to_ptr.vmem [resolvable:$true] %s188
      %191 = dma.vmem_to_hbm [thread:$0]  %s189, 256, %s3, [#allocation4]
    $region25: #{tpu_custom_call.1} parent=1 // pred_fallthru
      _
    // Predicated region
    $region26: #{tpu_custom_call.1} parent=1 // pred_check
      _
    $region27: #{tpu_custom_call.1} parent=1 // pred_check_branch
      %193 = sbr.rel (0) target = $region29
    $region28: #{tpu_custom_call.1} parent=1 // pred_region
      %194 = dma.done [#allocation4], 256
    $region29: #{tpu_custom_call.1} parent=1 // pred_fallthru
      _
    %195 = vsyncpa [#allocation3], 1
    %196 = vsyncpa [#allocation6], 1
    %197 = vsyncpa [#allocation4], 1

</llo_original>
